<compile_context>
chip_gen: v5e
topology: v5e:2x2
jax: 0.10.0
libtpu: 0.0.40
codegen_flags: <defaults>
</compile_context>

<pallas_src>
import functools

import jax
import jax.numpy as jnp
from jax.experimental import pallas as pl
from jax.experimental.pallas import tpu as pltpu

_LANE = 128
_SUBLANE = 8


def _round_up(v, m):
    return (v + m - 1) // m * m


def _choose_spatial_tile(hw, num_classes):
    """Pick a lane-tile T (multiple of 128) from the padded-f32 working set."""
    c_pad = _round_up(num_classes, _SUBLANE)
    budget = 1 << 20                       # ~1 MiB per padded-f32 (C, T) temporary
    t = max(_LANE, (budget // (c_pad * 4)) // _LANE * _LANE)
    # Keep >= 4 spatial tiles per batch when the image is large enough.
    t = min(t, max(_LANE, _round_up(int(pl.cdiv(hw, 4)), _LANE)))
    t = min(t, _round_up(hw, _LANE))
    # Prefer a tile that divides HW exactly (skips the ragged-mask ops).
    if hw % t != 0:
        cand = t
        while cand >= max(_LANE, t // 2):
            if hw % cand == 0:
                t = cand
                break
            cand -= _LANE
    return int(t)


def _vmem_limit_bytes(num_classes, tile_hw, logits_itemsize, targets_itemsize):
    """Explicit scoped-VMEM budget for the chosen tiling (with headroom)."""
    sub = {4: 8, 2: 16, 1: 32}
    c_pad = _round_up(num_classes, _SUBLANE)
    logits_blk = _round_up(num_classes, sub.get(logits_itemsize, 8)) * tile_hw * logits_itemsize
    targets_blk = sub.get(targets_itemsize, 8) * tile_hw * targets_itemsize
    f32_tmp = c_pad * tile_hw * 4
    out_blk = c_pad * _LANE * 4
    need = 2 * logits_blk + 2 * targets_blk + 8 * f32_tmp + 2 * out_blk
    need = int(need * 1.5) + (2 << 20)     # compiler-scratch headroom
    # Stay comfortably below v7x's 64 MiB physical VMEM per TensorCore.
    return int(min(max(need, 8 << 20), 48 << 20))


def _combined_loss_kernel(x_ref, t_ref, out_ref, *, num_classes, hw_valid,
                          tile_hw, tiles_per_split, ragged):
    s = pl.program_id(0)          # spatial split (parallel)
    h = pl.program_id(2)          # spatial tile within split (arbitrary/reduction)

    @pl.when(h == 0)
    def _():
        out_ref[...] = jnp.zeros_like(out_ref)

    # Native-dtype (bf16/f16/f32) block, cast to f32 per tile in VMEM.
    x = x_ref[0].astype(jnp.float32)                       # (C, T)
    C, T = x.shape
    # Targets arrive in their native integer width; widen after the load.
    t = t_ref[0].astype(jnp.int32)                         # (1, T)

    if ragged:
        gtile = s * tiles_per_split + h
        hw_idx = gtile * tile_hw + jax.lax.broadcasted_iota(jnp.int32, (1, T), 1)
        valid = hw_idx < hw_valid                          # (1, T) bool
        # Out-of-bounds lanes (garbage targets) -> class C: never matches.
        t = jnp.where(valid, t, num_classes)

    # Per-pixel softmax over the class (sublane) axis.
    m = jnp.max(x, axis=0, keepdims=True)                  # (1, T)
    e = jnp.exp(x - m)                                     # (C, T)
    ssum = jnp.sum(e, axis=0, keepdims=True)               # (1, T)
    # EUP approximate reciprocal + one Newton step (keeps the (C,T) divide off
    # the VALU slots while staying ~f32 accurate).
    inv_s = pl.reciprocal(ssum, approx=True)
    inv_s = inv_s * (2.0 - ssum * inv_s)
    probs = e * inv_s                                      # (C, T)

    # Boolean one-hot mask; select-based gathers (no f32 one_hot + multiplies).
    class_ids = jax.lax.broadcasted_iota(jnp.int32, (C, T), 0)
    match = class_ids == t                                 # (C, T) bool

    p_match = jnp.where(match, probs, 0.0)                 # probs at target class
    x_match = jnp.where(match, x, 0.0)                     # logits at target class
    onehot = jnp.where(match, 1.0, 0.0)

    log_s = jnp.log(ssum)                                  # exact log for CE
    if ragged:
        probs_v = jnp.where(valid, probs, 0.0)
        logz = jnp.where(valid, m + log_s, 0.0)
    else:
        probs_v = probs
        logz = m + log_s

    inter_c = jnp.sum(p_match, axis=1, keepdims=True)      # (C, 1)
    psum_c = jnp.sum(probs_v, axis=1, keepdims=True)       # (C, 1)
    osum_c = jnp.sum(onehot, axis=1, keepdims=True)        # (C, 1)
    # Cross-entropy partial:  sum (m + log s)  -  sum x[target].
    ce_part = jnp.sum(logz) - jnp.sum(x_match)             # scalar

    # Single lane-dense accumulator living in the (revisited) output block:
    # lane 0 = intersection, lane 1 = sum(probs), lane 2 = sum(one_hot),
    # lane 3 = CE partial (broadcast across rows; row 0 is read back).
    lane = jax.lax.broadcasted_iota(jnp.int32, (C, _LANE), 1)
    upd = jnp.where(lane == 0, inter_c, 0.0)
    upd = jnp.where(lane == 1, psum_c, upd)
    upd = jnp.where(lane == 2, osum_c, upd)
    upd = jnp.where(lane == 3, ce_part, upd)
    out_ref[0, 0] += upd


def combined_loss(logits, targets, *, alpha=0.5, beta=0.5, gamma=2.0,
                  smooth=1.0, tile_hw=None):
    """Pallas implementation of CombinedLoss.forward.

    logits:  (N, C, H, W) float (f32 / bf16 / f16 — shipped in native dtype)
    targets: (N, H, W) integer class indices in [0, C) — shipped in native width
             (uint8/int8 labels cut the target DMA stream 4x vs int32).
    Returns a scalar float32 loss.
    """
    if isinstance(logits, tuple):          # mirror forward(): take main output
        logits = logits[0]
    del gamma                              # defined in __init__ but unused in forward
    N, C, H, W = logits.shape
    HW = H * W

    if tile_hw is None:
        tile_hw = _choose_spatial_tile(HW, C)
    assert tile_hw % _LANE == 0, "spatial tile must be a multiple of 128 lanes"

    num_tiles = int(pl.cdiv(HW, tile_hw))
    # 2-way parallel split of the spatial axis (feeds both v7x TensorCores even
    # when N == 1); only when the tile count divides evenly.
    n_splits = 2 if (num_tiles >= 2 and num_tiles % 2 == 0) else 1
    tiles_per_split = num_tiles // n_splits
    ragged = (HW % tile_hw) != 0

    x = logits.reshape(N, C, HW)
    t = targets.reshape(N, 1, HW)
    if (not jnp.issubdtype(t.dtype, jnp.integer)) or t.dtype.itemsize > 4:
        t = t.astype(jnp.int32)

    kernel = functools.partial(
        _combined_loss_kernel, num_classes=C, hw_valid=HW, tile_hw=tile_hw,
        tiles_per_split=tiles_per_split, ragged=ragged)

    out_bytes = n_splits * N * C * _LANE * 4
    cost = pl.CostEstimate(
        flops=int(12 * N * C * num_tiles * tile_hw),
        transcendentals=int(N * C * num_tiles * tile_hw),
        bytes_accessed=int(x.size * x.dtype.itemsize
                           + t.size * t.dtype.itemsize + out_bytes))

    parts = pl.pallas_call(
        kernel,
        out_shape=jax.ShapeDtypeStruct((n_splits, N, C, _LANE), jnp.float32),
        grid_spec=pltpu.PrefetchScalarGridSpec(
            num_scalar_prefetch=0,
            grid=(n_splits, N, tiles_per_split),
            in_specs=[
                pl.BlockSpec((1, C, tile_hw),
                             lambda s, n, h: (n, 0, s * tiles_per_split + h)),
                pl.BlockSpec((1, 1, tile_hw),
                             lambda s, n, h: (n, 0, s * tiles_per_split + h)),
            ],
            out_specs=pl.BlockSpec((1, 1, C, _LANE),
                                   lambda s, n, h: (s, n, 0, 0)),
        ),
        compiler_params=pltpu.CompilerParams(
            dimension_semantics=("parallel", "parallel", "arbitrary"),
            vmem_limit_bytes=_vmem_limit_bytes(
                C, tile_hw, logits.dtype.itemsize, t.dtype.itemsize)),
        cost_estimate=cost,
    )(x, t)

    # Tiny cross-split / cross-batch combine in plain JAX (dice is non-linear,
    # so per-class partials — not dice values — are what crosses the split).
    inter = jnp.sum(parts[..., 0], axis=0)                  # (N, C)
    psum = jnp.sum(parts[..., 1], axis=0)                   # (N, C)
    osum = jnp.sum(parts[..., 2], axis=0)                   # (N, C)
    ce_sum = jnp.sum(parts[:, :, 0, 3])
    union = psum + osum
    dice = (2.0 * inter + smooth) / (union + smooth)
    dice_loss = 1.0 - jnp.mean(dice)
    ce_loss = ce_sum / jnp.float32(N * HW)
    return alpha * dice_loss + beta * ce_loss


def _reference_loss(logits, targets, *, alpha=0.5, beta=0.5, smooth=1.0):
    # Pure-JAX reference mirroring the PyTorch module.
    logits = logits.astype(jnp.float32)
    C = logits.shape[1]
    log_p = jax.nn.log_softmax(logits, axis=1)
    one_hot = jax.nn.one_hot(targets, C, axis=1, dtype=jnp.float32)   # (N,C,H,W)
    ce = -jnp.mean(jnp.sum(one_hot * log_p, axis=1))
    p = jax.nn.softmax(logits, axis=1)
    inter = jnp.sum(p * one_hot, axis=(2, 3))
    union = jnp.sum(p + one_hot, axis=(2, 3))
    dice = (2.0 * inter + smooth) / (union + smooth)
    dice_loss = 1.0 - dice.mean()
    return alpha * dice_loss + beta * ce


if __name__ == "__main__":
    key = jax.random.PRNGKey(0)
    k1, k2, k3, k4 = jax.random.split(key, 4)

    # 1) f32 logits, int32 targets; HW=512 -> 4 tiles -> 2-way spatial split x
    #    2 tiles each (exercises the split AND cross-tile accumulation).
    N, C, H, W = 2, 4, 16, 32
    logits = jax.random.normal(k1, (N, C, H, W), dtype=jnp.float32)
    targets = jax.random.randint(k2, (N, H, W), 0, C, dtype=jnp.int32)
    loss = jax.block_until_ready(
        combined_loss(logits, targets, alpha=0.5, beta=0.5, gamma=2.0, tile_hw=128))
    ref = _reference_loss(logits, targets, alpha=0.5, beta=0.5)
    assert jnp.allclose(loss, ref, rtol=1e-5, atol=1e-5), (loss, ref)

    # 2) bf16 logits + uint8 labels: native-width DMA for both streams.
    loss_bf16 = jax.block_until_ready(
        combined_loss(logits.astype(jnp.bfloat16), targets.astype(jnp.uint8),
                      tile_hw=128))
    ref_bf16 = _reference_loss(logits.astype(jnp.bfloat16), targets)
    assert jnp.allclose(loss_bf16, ref_bf16, rtol=1e-5, atol=1e-5), (loss_bf16, ref_bf16)

    # 3) Ragged spatial size (HW=100 < 128): in-kernel masking, no host-side pad.
    N2, C2, H2, W2 = 2, 3, 10, 10
    logits2 = jax.random.normal(k3, (N2, C2, H2, W2), dtype=jnp.float32)
    targets2 = jax.random.randint(k4, (N2, H2, W2), 0, C2, dtype=jnp.int32)
    loss2 = jax.block_until_ready(combined_loss(logits2, targets2))
    ref2 = _reference_loss(logits2, targets2)
    assert jnp.allclose(loss2, ref2, rtol=1e-5, atol=1e-5), (loss2, ref2)

    # 4) Odd tile count (HW=384 -> 3 tiles, no split), auto tile selection, N=1.
    N3, C3, H3, W3 = 1, 5, 16, 24
    k5, k6 = jax.random.split(k3)
    logits3 = jax.random.normal(k5, (N3, C3, H3, W3), dtype=jnp.float32)
    targets3 = jax.random.randint(k6, (N3, H3, W3), 0, C3, dtype=jnp.int32)
    loss3 = jax.block_until_ready(combined_loss(logits3, targets3))
    ref3 = _reference_loss(logits3, targets3)
    assert jnp.allclose(loss3, ref3, rtol=1e-5, atol=1e-5), (loss3, ref3)

    print("KERNEL_OK")
</pallas_src>

<mosaic_0001>
module attributes {stable_mosaic.version = 11 : i64} {
  func.func @_combined_loss_kernel(%arg0: i32, %arg1: i32, %arg2: i32, %arg3: memref<1x4x128xf32, #tpu.memory_space<vmem>>, %arg4: memref<1x1x128xi32, #tpu.memory_space<vmem>>, %arg5: memref<1x1x4x128xf32, #tpu.memory_space<vmem>>) attributes {dimension_semantics = [#tpu.dimension_semantics<parallel>, #tpu.dimension_semantics<parallel>, #tpu.dimension_semantics<arbitrary>], iteration_bounds = array<i64: 2, 2, 2>, scalar_prefetch = 0 : i64, scratch_operands = 0 : i64, tpu.core_type = #tpu.core_type<tc>, window_params = [{transform_indices = @transform_0, window_bounds = array<i64: 1, 4, 128>}, {transform_indices = @transform_1, window_bounds = array<i64: 1, 1, 128>}, {transform_indices = @transform_2, window_bounds = array<i64: 1, 1, 4, 128>}]} {
    %c0_i32 = arith.constant 0 : i32
    %0 = arith.cmpi eq, %arg2, %c0_i32 : i32
    %1 = arith.extui %0 : i1 to i32
    %c0_i32_0 = arith.constant 0 : i32
    %2 = arith.cmpi ne, %1, %c0_i32_0 : i32
    scf.if %2 {
      %cst_27 = arith.constant 0.000000e+00 : f32
      %75 = vector.broadcast %cst_27 : f32 to vector<1x1x4x128xf32>
      %c0_28 = arith.constant 0 : index
      %c0_29 = arith.constant 0 : index
      %c0_30 = arith.constant 0 : index
      %c0_31 = arith.constant 0 : index
      %76 = vector.load %arg5[%c0_28, %c0_29, %c0_30, %c0_31] : memref<1x1x4x128xf32, #tpu.memory_space<vmem>>, vector<1x1x4x128xf32>
      tpu.vector_store %arg5[%c0_28, %c0_29, %c0_30, %c0_31], %75 {strides = array<i32>} : memref<1x1x4x128xf32, #tpu.memory_space<vmem>>, vector<1x1x4x128xf32>,
    } else {
    }
    %c0 = arith.constant 0 : index
    %c0_1 = arith.constant 0 : index
    %c0_2 = arith.constant 0 : index
    %3 = vector.load %arg3[%c0, %c0_1, %c0_2] : memref<1x4x128xf32, #tpu.memory_space<vmem>>, vector<1x4x128xf32>
    %4 = vector.shape_cast %3 : vector<1x4x128xf32> to vector<4x128xf32>
    %c0_3 = arith.constant 0 : index
    %c0_4 = arith.constant 0 : index
    %c0_5 = arith.constant 0 : index
    %5 = vector.load %arg4[%c0_3, %c0_4, %c0_5] : memref<1x1x128xi32, #tpu.memory_space<vmem>>, vector<1x1x128xi32>
    %6 = vector.shape_cast %5 : vector<1x1x128xi32> to vector<1x128xi32>
    %cst = arith.constant dense<0xFF800000> : vector<128xf32>
    %7 = vector.multi_reduction <maximumf>, %4, %cst [0] : vector<4x128xf32> to vector<128xf32>
    %8 = vector.shape_cast %7 : vector<128xf32> to vector<1x128xf32>
    %9 = vector.broadcast %8 : vector<1x128xf32> to vector<4x128xf32>
    %10 = arith.subf %4, %9 : vector<4x128xf32>
    %11 = math.exp %10 : vector<4x128xf32>
    %cst_6 = arith.constant dense<0.000000e+00> : vector<128xf32>
    %12 = vector.multi_reduction <add>, %11, %cst_6 [0] : vector<4x128xf32> to vector<128xf32>
    %13 = vector.shape_cast %12 : vector<128xf32> to vector<1x128xf32>
    %14 = tpu.reciprocal %13 {approx = true} : vector<1x128xf32> -> vector<1x128xf32>
    %15 = arith.mulf %13, %14 : vector<1x128xf32>
    %cst_7 = arith.constant 2.000000e+00 : f32
    %16 = vector.broadcast %cst_7 : f32 to vector<1x128xf32>
    %17 = arith.subf %16, %15 : vector<1x128xf32>
    %18 = arith.mulf %14, %17 : vector<1x128xf32>
    %19 = vector.broadcast %18 : vector<1x128xf32> to vector<4x128xf32>
    %20 = arith.mulf %11, %19 : vector<4x128xf32>
    %21 = tpu.iota {dimensions = array<i32: 0>} : vector<4x128xi32>
    %22 = vector.broadcast %6 : vector<1x128xi32> to vector<4x128xi32>
    %23 = arith.cmpi eq, %21, %22 : vector<4x128xi32>
    %cst_8 = arith.constant 0.000000e+00 : f32
    %24 = vector.broadcast %cst_8 : f32 to vector<4x128xf32>
    %25 = arith.select %23, %20, %24 : vector<4x128xi1>, vector<4x128xf32>
    %cst_9 = arith.constant 0.000000e+00 : f32
    %26 = vector.broadcast %cst_9 : f32 to vector<4x128xf32>
    %27 = arith.select %23, %4, %26 : vector<4x128xi1>, vector<4x128xf32>
    %cst_10 = arith.constant 1.000000e+00 : f32
    %cst_11 = arith.constant 0.000000e+00 : f32
    %28 = vector.broadcast %cst_10 : f32 to vector<4x128xf32>
    %29 = vector.broadcast %cst_11 : f32 to vector<4x128xf32>
    %30 = arith.select %23, %28, %29 : vector<4x128xi1>, vector<4x128xf32>
    %31 = math.log %13 : vector<1x128xf32>
    %32 = arith.addf %8, %31 : vector<1x128xf32>
    %cst_12 = arith.constant dense<0.000000e+00> : vector<4xf32>
    %33 = vector.multi_reduction <add>, %25, %cst_12 [1] : vector<4x128xf32> to vector<4xf32>
    %34 = vector.shape_cast %33 : vector<4xf32> to vector<4x1xf32>
    %cst_13 = arith.constant dense<0.000000e+00> : vector<4xf32>
    %35 = vector.multi_reduction <add>, %20, %cst_13 [1] : vector<4x128xf32> to vector<4xf32>
    %36 = vector.shape_cast %35 : vector<4xf32> to vector<4x1xf32>
    %cst_14 = arith.constant dense<0.000000e+00> : vector<4xf32>
    %37 = vector.multi_reduction <add>, %30, %cst_14 [1] : vector<4x128xf32> to vector<4xf32>
    %38 = vector.shape_cast %37 : vector<4xf32> to vector<4x1xf32>
    %39 = vector.shape_cast %32 : vector<1x128xf32> to vector<1x1x128xf32>
    %cst_15 = arith.constant dense<0.000000e+00> : vector<1xf32>
    %40 = vector.multi_reduction <add>, %39, %cst_15 [1, 2] : vector<1x1x128xf32> to vector<1xf32>
    %41 = vector.shape_cast %40 : vector<1xf32> to vector<1x1x1xf32>
    %42 = vector.extract %41[0, 0, 0] : f32 from vector<1x1x1xf32>
    %43 = vector.shape_cast %27 : vector<4x128xf32> to vector<1x4x128xf32>
    %cst_16 = arith.constant dense<0.000000e+00> : vector<1xf32>
    %44 = vector.multi_reduction <add>, %43, %cst_16 [1, 2] : vector<1x4x128xf32> to vector<1xf32>
    %45 = vector.shape_cast %44 : vector<1xf32> to vector<1x1x1xf32>
    %46 = vector.extract %45[0, 0, 0] : f32 from vector<1x1x1xf32>
    %47 = arith.subf %42, %46 : f32
    %48 = tpu.iota {dimensions = array<i32: 1>} : vector<4x128xi32>
    %c0_i32_17 = arith.constant 0 : i32
    %49 = vector.broadcast %c0_i32_17 : i32 to vector<4x128xi32>
    %50 = arith.cmpi eq, %48, %49 : vector<4x128xi32>
    %cst_18 = arith.constant 0.000000e+00 : f32
    %51 = vector.shape_cast %34 : vector<4x1xf32> to vector<4x1xf32>
    %52 = vector.broadcast %51 : vector<4x1xf32> to vector<4x128xf32>
    %53 = vector.broadcast %cst_18 : f32 to vector<4x128xf32>
    %54 = arith.select %50, %52, %53 : vector<4x128xi1>, vector<4x128xf32>
    %c1_i32 = arith.constant 1 : i32
    %55 = vector.broadcast %c1_i32 : i32 to vector<4x128xi32>
    %56 = arith.cmpi eq, %48, %55 : vector<4x128xi32>
    %57 = vector.shape_cast %36 : vector<4x1xf32> to vector<4x1xf32>
    %58 = vector.broadcast %57 : vector<4x1xf32> to vector<4x128xf32>
    %59 = arith.select %56, %58, %54 : vector<4x128xi1>, vector<4x128xf32>
    %c2_i32 = arith.constant 2 : i32
    %60 = vector.broadcast %c2_i32 : i32 to vector<4x128xi32>
    %61 = arith.cmpi eq, %48, %60 : vector<4x128xi32>
    %62 = vector.shape_cast %38 : vector<4x1xf32> to vector<4x1xf32>
    %63 = vector.broadcast %62 : vector<4x1xf32> to vector<4x128xf32>
    %64 = arith.select %61, %63, %59 : vector<4x128xi1>, vector<4x128xf32>
    %c3_i32 = arith.constant 3 : i32
    %65 = vector.broadcast %c3_i32 : i32 to vector<4x128xi32>
    %66 = arith.cmpi eq, %48, %65 : vector<4x128xi32>
    %67 = vector.broadcast %47 : f32 to vector<4x128xf32>
    %68 = arith.select %66, %67, %64 : vector<4x128xi1>, vector<4x128xf32>
    %c0_19 = arith.constant 0 : index
    %c0_20 = arith.constant 0 : index
    %c0_21 = arith.constant 0 : index
    %c0_22 = arith.constant 0 : index
    %69 = vector.load %arg5[%c0_19, %c0_20, %c0_21, %c0_22] : memref<1x1x4x128xf32, #tpu.memory_space<vmem>>, vector<1x1x4x128xf32>
    %70 = vector.shape_cast %69 : vector<1x1x4x128xf32> to vector<4x128xf32>
    %71 = arith.addf %70, %68 : vector<4x128xf32>
    %c0_23 = arith.constant 0 : index
    %c0_24 = arith.constant 0 : index
    %c0_25 = arith.constant 0 : index
    %c0_26 = arith.constant 0 : index
    %72 = vector.load %arg5[%c0_23, %c0_24, %c0_25, %c0_26] : memref<1x1x4x128xf32, #tpu.memory_space<vmem>>, vector<1x1x4x128xf32>
    %73 = vector.shape_cast %72 : vector<1x1x4x128xf32> to vector<4x128xf32>
    %74 = vector.shape_cast %71 : vector<4x128xf32> to vector<1x1x4x128xf32>
    tpu.vector_store %arg5[%c0_23, %c0_24, %c0_25, %c0_26], %74 {strides = array<i32>} : memref<1x1x4x128xf32, #tpu.memory_space<vmem>>, vector<1x1x4x128xf32>,
    return
  }
  func.func @transform_0(%arg0: i32, %arg1: i32, %arg2: i32) -> (i32, i32, i32) {
    %c2_i32 = arith.constant 2 : i32
    %0 = arith.muli %arg0, %c2_i32 : i32
    %1 = arith.addi %0, %arg2 : i32
    %c0_i32 = arith.constant 0 : i32
    %c0_i32_0 = arith.constant 0 : i32
    return %arg1, %c0_i32, %1 : i32, i32, i32
  }
  func.func @transform_1(%arg0: i32, %arg1: i32, %arg2: i32) -> (i32, i32, i32) {
    %c2_i32 = arith.constant 2 : i32
    %0 = arith.muli %arg0, %c2_i32 : i32
    %1 = arith.addi %0, %arg2 : i32
    %c0_i32 = arith.constant 0 : i32
    %c0_i32_0 = arith.constant 0 : i32
    return %arg1, %c0_i32, %1 : i32, i32, i32
  }
  func.func @transform_2(%arg0: i32, %arg1: i32, %arg2: i32) -> (i32, i32, i32, i32) {
    %c0_i32 = arith.constant 0 : i32
    %c0_i32_0 = arith.constant 0 : i32
    %c0_i32_1 = arith.constant 0 : i32
    return %arg0, %arg1, %c0_i32, %c0_i32_0 : i32, i32, i32, i32
  }
}

</mosaic_0001>

<llo_original>
// kernel: tpu_custom_call.1
$region0: #{tpu_custom_call.1}
  #allocation0 [shape = 'u32[]', space=smem, size = 0x4, offset = 0x4, fixed_abs, tag = 'smem constant byte address 0x4 - core index']
  #allocation1 [shape = 'u32[72,128]{1,0:T(1,128)}', space=vmem, size = 0x9000, scoped, tag = 'internal scratch']
  %s0 = inlined_call_operand.hbm [shape: f32[2,4,512], index: 0, kind: input, shape index: {}]
  %s1 = inlined_call_operand.hbm [shape: s32[2,1,512], index: 1, kind: input, shape index: {}]
  %s2 = inlined_call_operand.hbm [shape: f32[2,2,4,128], index: 2, kind: output, shape index: {}]
  %s3 = sld [smem:[#allocation0]]
  $region53: #{tpu_custom_call.1} parent=0
    _
  %s5 = ssub.s32 1, %s3
  %s6 = scalar_select 0, %s5, %s3
  $region1: #{tpu_custom_call.1} parent=0
    #allocation2 [shape = 'u8[4096]{0}', space=vmem, size = 0x1000, scoped, tag = 'input window, operand 0']
    #allocation3 [shape = 's32[2]{0}', space=sflag, size = 0x8, scoped, tag = 'scoped memory for tpu_custom_call.1']
    #allocation4 [shape = 's32[2]{0}', space=sflag, size = 0x8, scoped, tag = 'scoped memory for tpu_custom_call.1']
    #allocation5 [shape = 'u8[1024]{0}', space=vmem, size = 0x400, scoped, tag = 'input window, operand 1']
    #allocation6 [shape = 's32[2]{0}', space=sflag, size = 0x8, scoped, tag = 'scoped memory for tpu_custom_call.1']
    #allocation7 [shape = 'u8[4096]{0}', space=vmem, size = 0x1000, scoped, tag = 'output window, operand 0']
    %7 = vsyncpa [#allocation3], 0
    %s8 = scalar_lea.sflag [#allocation3], 1
    %9 = vsyncpa %s8, 0
    %10 = vsyncpa [#allocation6], 0
    %s11 = scalar_lea.sflag [#allocation6], 1
    %12 = vsyncpa %s11, 0
    %13 = vsyncpa [#allocation4], 0
    %s14 = scalar_lea.sflag [#allocation4], 1
    %15 = vsyncpa %s14, 0
    loop: start=0, step=1, limit=10
    $region2: #{tpu_custom_call.1} parent=1 // loop_pre_header
      _
    $region3: #{tpu_custom_call.1} parent=1 // loop_header
      %s17 = sphi 0, %s21
      %p18 = scmp.ge.s32.totalorder %s17, 10
      %s24 = sphi 0, %s43
      %s25 = sphi 0, %s39
      %s26 = sphi 0, %s35
      %s27 = sphi 0, %s24
      %s28 = sphi 0, %s25
      %s29 = sphi 0, %s26
      %s30 = sphi 0, %s27
      %s31 = sphi 0, %s28
      %s32 = sphi 0, %s29
      %s52 = sphi 0, %s54
      %s55 = sphi 0, %s52
      %s56 = sphi 0, %s55
      %s72 = sphi 0, %s56
      %s84 = sphi 0, %s86
      %s87 = sphi 0, %s84
      %s88 = sphi 0, %s87
      %s104 = sphi 0, %s88
      %s112 = sphi 0, %s114
      %s115 = sphi 0, %s112
      %s116 = sphi 0, %s115
      %s132 = sphi 0, %s116
    $region4: #{tpu_custom_call.1} parent=1 // loop_header_branch
      %20 = sbr.rel (%p18) target = $region8
    $region5: #{tpu_custom_call.1} parent=1 // loop_body
      %s22 = ssub.s32 %s17, 1
      %s23 = ssub.s32 %s17, 2
      %s33 = sadd.s32 1, %s26
      %p34 = scmp.ge.s32.totalorder %s33, 2
      %s35 = scalar_select %p34, 0, %s33
      %s36 = sadd.s32 1, %s25
      %s37 = scalar_select %p34, %s36, %s25
      %p38 = scmp.ge.s32.totalorder %s37, 2
      %s39 = scalar_select %p38, 0, %s37
      %s40 = sadd.s32 1, %s24
      %s41 = scalar_select %p38, %s40, %s24
      %p42 = scmp.ge.s32.totalorder %s41, 2
      %s43 = scalar_select %p42, 0, %s41
      %s44 = smul.u32 %s24, 2
      %s45 = sadd.s32 %s44, %s26
      %s46 = smul.u32 %s43, 2
      %s47 = sadd.s32 %s46, %s35
      %s48 = ssub.s32 %s25, %s39
      %s49 = ssub.s32 %s45, %s47
      %s50 = sor.u32 %s48, %s49
      %p51 = scmp.eq.s32.totalorder %s50, 0
      %s53 = sadd.s32 %s52, 1
      %s54 = scalar_select %p51, %s52, %s53
      %p57 = pneg %p51
      %p58 = scmp.eq.s32.totalorder %s17, 7
      %p59 = por %p57, %p58
      %p60 = scmp.ne.s32.totalorder %s52, %s55
      %p61 = scmp.eq.s32.totalorder %s17, 0
      %p62 = por %p60, %p61
      %p63 = scmp.ne.s32.totalorder %s52, %s55
      %p64 = scmp.eq.s32.totalorder %s22, 7
      %p65 = por %p63, %p64
      %p66 = scmp.ne.s32.totalorder %s55, %s56
      %p67 = scmp.eq.s32.totalorder %s22, 0
      %p68 = por %p66, %p67
      %p69 = scmp.ne.s32.totalorder %s55, %s56
      %p70 = scmp.eq.s32.totalorder %s23, 7
      %p71 = por %p69, %p70
      %p73 = scmp.ne.s32.totalorder %s56, %s72
      %p74 = scmp.eq.s32.totalorder %s23, 0
      %p75 = por %p73, %p74
      %s76 = smul.u32 %s24, 2
      %s77 = sadd.s32 %s76, %s26
      %s78 = smul.u32 %s43, 2
      %s79 = sadd.s32 %s78, %s35
      %s80 = ssub.s32 %s25, %s39
      %s81 = ssub.s32 %s77, %s79
      %s82 = sor.u32 %s80, %s81
      %p83 = scmp.eq.s32.totalorder %s82, 0
      %s85 = sadd.s32 %s84, 1
      %s86 = scalar_select %p83, %s84, %s85
      %p89 = pneg %p83
      %p90 = scmp.eq.s32.totalorder %s17, 7
      %p91 = por %p89, %p90
      %p92 = scmp.ne.s32.totalorder %s84, %s87
      %p93 = scmp.eq.s32.totalorder %s17, 0
      %p94 = por %p92, %p93
      %p95 = scmp.ne.s32.totalorder %s84, %s87
      %p96 = scmp.eq.s32.totalorder %s22, 7
      %p97 = por %p95, %p96
      %p98 = scmp.ne.s32.totalorder %s87, %s88
      %p99 = scmp.eq.s32.totalorder %s22, 0
      %p100 = por %p98, %p99
      %p101 = scmp.ne.s32.totalorder %s87, %s88
      %p102 = scmp.eq.s32.totalorder %s23, 7
      %p103 = por %p101, %p102
      %p105 = scmp.ne.s32.totalorder %s88, %s104
      %p106 = scmp.eq.s32.totalorder %s23, 0
      %p107 = por %p105, %p106
      %s108 = ssub.s32 %s24, %s43
      %s109 = ssub.s32 %s25, %s39
      %s110 = sor.u32 %s108, %s109
      %p111 = scmp.eq.s32.totalorder %s110, 0
      %s113 = sadd.s32 %s112, 1
      %s114 = scalar_select %p111, %s112, %s113
      %p117 = pneg %p111
      %p118 = scmp.eq.s32.totalorder %s17, 7
      %p119 = por %p117, %p118
      %p120 = scmp.ne.s32.totalorder %s112, %s115
      %p121 = scmp.eq.s32.totalorder %s17, 0
      %p122 = por %p120, %p121
      %p123 = scmp.ne.s32.totalorder %s112, %s115
      %p124 = scmp.eq.s32.totalorder %s22, 7
      %p125 = por %p123, %p124
      %p126 = scmp.ne.s32.totalorder %s115, %s116
      %p127 = scmp.eq.s32.totalorder %s22, 0
      %p128 = por %p126, %p127
      %p129 = scmp.ne.s32.totalorder %s115, %s116
      %p130 = scmp.eq.s32.totalorder %s23, 7
      %p131 = por %p129, %p130
      %p133 = scmp.ne.s32.totalorder %s116, %s132
      %p134 = scmp.eq.s32.totalorder %s23, 0
      %p135 = por %p133, %p134
      %p136 = scmp.le.s32.totalorder 1, %s17
      %p137 = scmp.lt.s32.totalorder %s17, 9
      %p138 = pnand %p136, %p137
      %p139 = pneg %p138
      // Predicated region
      $region9: #{tpu_custom_call.1} parent=5 // pred_check
        _
      $region10: #{tpu_custom_call.1} parent=5 // pred_check_branch
        %141 = sbr.rel (%p138) target = $region12
      $region11: #{tpu_custom_call.1} parent=5 // pred_region
        %s142 = ssub.s32 %s17, 1
      $region12: #{tpu_custom_call.1} parent=5 // pred_fallthru
        _
      %p143 = scmp.lt.s32.totalorder %s17, 8
      // Predicated region
      $region13: #{tpu_custom_call.1} parent=5 // pred_check
        %p144 = pneg %p143
      $region14: #{tpu_custom_call.1} parent=5 // pred_check_branch
        %146 = sbr.rel (%p144) target = $region16
      $region15: #{tpu_custom_call.1} parent=5 // pred_region
        // Predicated region
        $region17: #{tpu_custom_call.1} parent=15 // pred_check
          %p147 = pneg %p62
        $region18: #{tpu_custom_call.1} parent=15 // pred_check_branch
          %149 = sbr.rel (%p147) target = $region20
        $region19: #{tpu_custom_call.1} parent=15 // pred_region
          %s150 = sand.u32 %s52, 1
          %s151 = scalar_lea.sflag [#allocation3], %s150
          %s152 = sand.u32 %s52, 1
          %s153 = smul.addr %s152, 4
          %s154 = scalar_lea.vmem [#allocation2], %s153
          %s155 = smul.u32 %s24, 2
          %s156 = sadd.s32 %s155, %s26
          %158 = vsyncadd %s151, 0
          %s159 = smul.addr %s25, 4
          %s160 = sadd.s32 %s156, %s159
          %s161 = smul.addr %s160, 4
          %s162 = scalar_lea.hbm %s0, %s161
          %s164 = sshll.u32 %s162, 4
          %s165 = int_to_ptr.hbm [resolvable:$true] %s164
          %s166 = sshll.u32 %s154, 4
          %s167 = int_to_ptr.vmem [resolvable:$true] %s166
          %169 = dma.hbm_to_vmem [thread:$0]  %s165, 64, %s167, %s151
        $region20: #{tpu_custom_call.1} parent=15 // pred_fallthru
          _
        // Predicated region
        $region21: #{tpu_custom_call.1} parent=15 // pred_check
          %p170 = pneg %p94
        $region22: #{tpu_custom_call.1} parent=15 // pred_check_branch
          %172 = sbr.rel (%p170) target = $region24
        $region23: #{tpu_custom_call.1} parent=15 // pred_region
          %s173 = sand.u32 %s84, 1
          %s174 = scalar_lea.sflag [#allocation6], %s173
          %s175 = sand.u32 %s84, 1
          %s176 = scalar_lea.vmem [#allocation5], %s175
          %s177 = smul.u32 %s24, 2
          %s178 = sadd.s32 %s177, %s26
          %180 = vsyncadd %s174, 0
          %s181 = smul.addr %s25, 4
          %s182 = sadd.s32 %s178, %s181
          %s183 = scalar_lea.hbm %s1, %s182
          %s185 = sshll.u32 %s183, 4
          %s186 = int_to_ptr.hbm [resolvable:$true] %s185
          %s187 = sshll.u32 %s176, 4
          %s188 = int_to_ptr.vmem [resolvable:$true] %s187
          %190 = dma.hbm_to_vmem [thread:$0]  %s186, 16, %s188, %s174
        $region24: #{tpu_custom_call.1} parent=15 // pred_fallthru
          _
      $region16: #{tpu_custom_call.1} parent=5 // pred_fallthru
        _
      %p191 = scmp.le.s32.totalorder 1, %s17
      %p192 = scmp.lt.s32.totalorder %s17, 9
      %p193 = pnand %p191, %p192
      %p194 = pneg %p193
      // Predicated region
      $region25: #{tpu_custom_call.1} parent=5 // pred_check
        _
      $region26: #{tpu_custom_call.1} parent=5 // pred_check_branch
        %196 = sbr.rel (%p193) target = $region28
      $region27: #{tpu_custom_call.1} parent=5 // pred_region
        %s197 = ssub.s32 %s17, 1
        %s198 = sand.u32 %s55, 1
        %s199 = scalar_lea.sflag [#allocation3], %s198
        %s200 = sand.u32 %s55, 1
        %s201 = smul.addr %s200, 4
        %s202 = scalar_lea.vmem [#allocation2], %s201
        // Predicated region
        $region29: #{tpu_custom_call.1} parent=27 // pred_check
          %p203 = pneg %p68
        $region30: #{tpu_custom_call.1} parent=27 // pred_check_branch
          %205 = sbr.rel (%p203) target = $region32
        $region31: #{tpu_custom_call.1} parent=27 // pred_region
          %207 = dma.done %s199, 64
        $region32: #{tpu_custom_call.1} parent=27 // pred_fallthru
          _
        %s208 = sand.u32 %s87, 1
        %s209 = scalar_lea.sflag [#allocation6], %s208
        %s210 = sand.u32 %s87, 1
        %s211 = scalar_lea.vmem [#allocation5], %s210
        // Predicated region
        $region33: #{tpu_custom_call.1} parent=27 // pred_check
          %p212 = pneg %p100
        $region34: #{tpu_custom_call.1} parent=27 // pred_check_branch
          %214 = sbr.rel (%p212) target = $region36
        $region35: #{tpu_custom_call.1} parent=27 // pred_region
          %216 = dma.done %s209, 16
        $region36: #{tpu_custom_call.1} parent=27 // pred_fallthru
          _
        %s217 = sand.u32 %s55, 1
        %s218 = scalar_lea.sflag [#allocation3], %s217
        %s219 = sand.u32 %s55, 1
        %s220 = smul.addr %s219, 4
        %s221 = scalar_lea.vmem [#allocation2], %s220
        %p222 = pneg %p68
        %p223 = pneg %p65
        %s224 = sand.u32 %s87, 1
        %s225 = scalar_lea.sflag [#allocation6], %s224
        %s226 = sand.u32 %s87, 1
        %s227 = scalar_lea.vmem [#allocation5], %s226
        %p228 = pneg %p100
        %p229 = pneg %p97
        %p230 = pneg %p128
        %p231 = pneg %p125
        %s232 = sand.u32 %s115, 1
        %s233 = scalar_lea.sflag [#allocation4], %s232
        %s234 = sand.u32 %s115, 1
        %s235 = smul.addr %s234, 4
        %s236 = scalar_lea.vmem [#allocation7], %s235
        %s237 = smul.u32 %s27, 2
        %s238 = sadd.s32 %s237, %s29
        %s239 = smul.u32 %s27, 2
        %s240 = sadd.s32 %s239, %s29
        %p241 = scmp.eq.s32.totalorder %s29, 0
        // Predicated region
        $region37: #{tpu_custom_call.1} parent=27 // pred_check
          %p242 = pneg %p241
        $region38: #{tpu_custom_call.1} parent=27 // pred_check_branch
          %244 = sbr.rel (%p242) target = $region40
        $region39: #{tpu_custom_call.1} parent=27 // pred_region
          %245 = vst [vmem:[%s236] sm:$0xf] 0.0
        $region40: #{tpu_custom_call.1} parent=27 // pred_fallthru
          _
        %v246 = vld [vmem:[%s202] sm:$0xf]
        %v247 = vld [vmem:[%s211] sm:$0x1]
        %vm248 = vcmask 1043456
        %v249 = vsel %vm248, %v246, -inf
        %v250 = vrot.slane %v249, 4
        %v251 = vmax.f32 %v249, %v250
        %v252 = vrot.slane %v251, 2
        %v253 = vmax.f32 %v251, %v252
        %v254 = vrot.slane %v253, 1
        %v255 = vmax.f32 %v253, %v254
        %v256 = vsub.f32 %v246, %v255
        %v257 = vmul.f32 %v256, 1.442695
        %v258 = vpow.pop %v257
        %v259 = vsel %vm248, %v258, 0.0
        %v260 = vrot.slane %v259, 4
        %v261 = vadd.f32 %v259, %v260
        %v262 = vrot.slane %v261, 2
        %v263 = vadd.f32 %v261, %v262
        %v264 = vrot.slane %v263, 1
        %v265 = vadd.f32 %v263, %v264
        %v266 = vrcp.pop %v265
        %v267 = vmul.f32 %v265, %v266
        %v268 = vsub.f32 2.0, %v267
        %v269 = vmul.f32 %v266, %v268
        %v270 = vmul.f32 %v258, %v269
        %v271 = vlaneseq
        %v272 = vshrl.u32 %v271, 7
        %v273 = vperm.slane %v247, 0
        %vm274 = vcmp.eq.s32.totalorder %v272, %v273
        %v275 = vsel %vm274, %v270, 0.0
        %v276 = vsel %vm274, %v246, 0.0
        %v277 = vsel %vm274, 1.0, 0.0
        %v278 = vlog2.pop %v265
        %v279 = vmul.f32 %v278, 0.6931472
        %v280 = vadd.f32 %v255, %v279
        %v281 = vsel %vm248, %v275, 0.0
        %282 = vadd.xlane.f32.xlu0 %v281
        %v283 = vpop.xlane.xlu0 %282
        %v284 = vsel %vm248, %v270, 0.0
        %285 = vadd.xlane.f32.xlu0 %v284
        %v286 = vpop.xlane.xlu0 %285
        %v287 = vsel %vm248, %v277, 0.0
        %288 = vadd.xlane.f32.xlu0 %v287
        %v289 = vpop.xlane.xlu0 %288
        %vm290 = vcmask 1040384
        %v291 = vsel %vm290, %v280, 0.0
        %292 = vadd.xlane.f32.xlu0 %v291
        %v293 = vpop.xlane.xlu0 %292
        %v294 = vrot.slane %v293, 4
        %v295 = vadd.f32 %v293, %v294
        %v296 = vrot.slane %v295, 2
        %v297 = vadd.f32 %v295, %v296
        %v298 = vrot.slane %v297, 1
        %v299 = vadd.f32 %v297, %v298
        %s300 = vtos %v299
        %v301 = vsel %vm248, %v276, 0.0
        %302 = vadd.xlane.f32.xlu0 %v301
        %v303 = vpop.xlane.xlu0 %302
        %v304 = vrot.slane %v303, 4
        %v305 = vadd.f32 %v303, %v304
        %v306 = vrot.slane %v305, 2
        %v307 = vadd.f32 %v305, %v306
        %v308 = vrot.slane %v307, 1
        %v309 = vadd.f32 %v307, %v308
        %s310 = vtos %v309
        %s311 = ssub.f32 %s300, %s310
        %v312 = vlaneseq
        %v313 = vand.u32 %v312, 127
        %vm314 = vcmp.eq.s32.totalorder %v313, 0
        %v315 = vsel %vm314, %v283, 0.0
        %vm316 = vcmp.eq.s32.totalorder %v313, 1
        %v317 = vsel %vm316, %v286, %v315
        %vm318 = vcmp.eq.s32.totalorder %v313, 2
        %v319 = vsel %vm318, %v289, %v317
        %vm320 = vcmp.eq.s32.totalorder %v313, 3
        %v321 = vstv %s311
        %v322 = vsel %vm320, %v321, %v319
        %v323 = vld [vmem:[%s236] sm:$0xf]
        %v324 = vadd.f32 %v323, %v322
        %325 = vst [vmem:[%s236] sm:$0xf] %v324
        %s326 = sand.u32 %s115, 1
        %s327 = scalar_lea.sflag [#allocation4], %s326
        %s328 = sand.u32 %s115, 1
        %s329 = smul.addr %s328, 4
        %s330 = scalar_lea.vmem [#allocation7], %s329
        // Predicated region
        $region41: #{tpu_custom_call.1} parent=27 // pred_check
          %p331 = pneg %p125
        $region42: #{tpu_custom_call.1} parent=27 // pred_check_branch
          %333 = sbr.rel (%p331) target = $region44
        $region43: #{tpu_custom_call.1} parent=27 // pred_region
          %335 = vsyncadd %s327, 0
          %s336 = smul.addr %s27, 2
          %s337 = sadd.s32 %s28, %s336
          %s338 = smul.addr %s337, 4
          %s339 = scalar_lea.hbm %s2, %s338
          %s341 = sshll.u32 %s330, 4
          %s342 = int_to_ptr.vmem [resolvable:$true] %s341
          %s343 = sshll.u32 %s339, 4
          %s344 = int_to_ptr.hbm [resolvable:$true] %s343
          %346 = dma.vmem_to_hbm [thread:$0]  %s342, 64, %s344, %s327
        $region44: #{tpu_custom_call.1} parent=27 // pred_fallthru
          _
      $region28: #{tpu_custom_call.1} parent=5 // pred_fallthru
        _
      %p347 = scmp.le.s32.totalorder 2, %s17
      // Predicated region
      $region45: #{tpu_custom_call.1} parent=5 // pred_check
        %p348 = pneg %p347
      $region46: #{tpu_custom_call.1} parent=5 // pred_check_branch
        %350 = sbr.rel (%p348) target = $region48
      $region47: #{tpu_custom_call.1} parent=5 // pred_region
        %s351 = ssub.s32 %s17, 2
        // Predicated region
        $region49: #{tpu_custom_call.1} parent=47 // pred_check
          %p352 = pneg %p131
        $region50: #{tpu_custom_call.1} parent=47 // pred_check_branch
          %354 = sbr.rel (%p352) target = $region52
        $region51: #{tpu_custom_call.1} parent=47 // pred_region
          %s355 = sand.u32 %s116, 1
          %s356 = scalar_lea.sflag [#allocation4], %s355
          %s357 = sand.u32 %s116, 1
          %s358 = smul.addr %s357, 4
          %s359 = scalar_lea.vmem [#allocation7], %s358
          %361 = dma.done %s356, 64
        $region52: #{tpu_custom_call.1} parent=47 // pred_fallthru
          _
      $region48: #{tpu_custom_call.1} parent=5 // pred_fallthru
        _
    $region6: #{tpu_custom_call.1} parent=1 // loop_footer
      %s21 = sadd.s32 1, %s17
    $region7: #{tpu_custom_call.1} parent=1 // loop_footer_branch
      %16 = sbr.rel target = $region3
    $region8: #{tpu_custom_call.1} parent=1 // loop_exit
      _
    %362 = vsyncpa [#allocation3], 1
    %s363 = scalar_lea.sflag [#allocation3], 1
    %364 = vsyncpa %s363, 1
    %365 = vsyncpa [#allocation6], 1
    %s366 = scalar_lea.sflag [#allocation6], 1
    %367 = vsyncpa %s366, 1
    %368 = vsyncpa [#allocation4], 1
    %s369 = scalar_lea.sflag [#allocation4], 1
    %370 = vsyncpa %s369, 1

</llo_original>
